<compile_context>
chip_gen: v5e
topology: v5e:2x2
jax: 0.10.0
libtpu: 0.0.40
codegen_flags: <defaults>
</compile_context>

<pallas_src>
import functools

import jax
import jax.numpy as jnp
from jax.experimental import pallas as pl
from jax.experimental.pallas import tpu as pltpu


def _round_up(x, m):
    return (x + m - 1) // m * m


def _cdiv(a, b):
    return (a + b - 1) // b


def _physical_vmem_bytes():
    """Per-generation physical VMEM (v5e/v6e: 128 MiB, v7x: 64 MiB)."""
    try:
        info = pltpu.get_tpu_info()
        v = getattr(info, "vmem_capacity_bytes", None)
        if v:
            return int(v)
    except Exception:
        pass
    return 64 * 1024 * 1024  # conservative (v7x) fallback


def _resident_spec(shape, index_map):
    """BlockSpec for a constant-index (weight/bias) operand.

    Buffered(1): a constant index_map never re-fetches, so double-buffering
    would only double its VMEM footprint.  Falls back to a plain BlockSpec if
    this jax version has no pipeline_mode kwarg.
    """
    if hasattr(pl, "Buffered"):
        try:
            return pl.BlockSpec(shape, index_map, pipeline_mode=pl.Buffered(1))
        except TypeError:
            pass
    return pl.BlockSpec(shape, index_map)


# ------------------------------ fused kernel -------------------------------


def _fused_mlp_kernel(*refs, n_layers, relus, inject, d_out_pads, cov_offsets):
    """Run the whole (inject-)MLP stack on one batch tile.

    refs layout:
      [0] xm_ref : [TB, in0_pad]      zero-padded main activations
      [1] xc_ref : [TB, d_cov]        covariate slice (constant across layers)
      [2 .. 2+L)            wm_i : [in_i_pad, out_i_pad]  per-layer main weights
      [2+L]       wc_ref : [d_cov, cov_width]  injected layers' cov weights
      [3+L .. 3+2L)         b_i  : [1, out_i_pad]         per-layer biases (f32)
      [3+2L]      o_ref  : [TB, out_last_pad]  output (lane dense)
      [4+2L]      cov_sc : [TB, cov_width]     VMEM scratch (f32)
    """
    xm_ref = refs[0]
    xc_ref = refs[1]
    wm_refs = refs[2:2 + n_layers]
    wc_ref = refs[2 + n_layers]
    b_refs = refs[3 + n_layers:3 + 2 * n_layers]
    o_ref = refs[3 + 2 * n_layers]
    cov_ref = refs[4 + 2 * n_layers]

    w_dtype = wm_refs[0].dtype

    # All injected layers' covariate contributions in ONE matmul (K = d_cov is
    # tiny; fusing avoids L low-utilization MXU pushes).  Stored to explicit
    # VMEM scratch so the unrolled layer loop doesn't hold it in vregs.
    cov_ref[...] = jnp.dot(xc_ref[...].astype(w_dtype), wc_ref[...],
                           preferred_element_type=jnp.float32)

    h = xm_ref[...]
    for i in range(n_layers):                    # L is static -> unrolled
        acc = jnp.dot(h.astype(w_dtype), wm_refs[i][...],
                      preferred_element_type=jnp.float32)
        if i == 0 or inject:
            off = cov_offsets[i]
            acc = acc + cov_ref[:, off:off + d_out_pads[i]]
        acc = acc + b_refs[i][...]
        if relus[i]:
            acc = jnp.maximum(acc, 0.0)
        h = acc
    o_ref[...] = h.astype(o_ref.dtype)


# ------------------------- SequentialInject wrapper ------------------------


class SequentialInject:
    """JAX/Pallas port of the PyTorch SequentialInject module.

    `layers` is a list of (weight[in, out], bias[1, out], relu: bool) tuples:
    for layer i, in == prev_out (+ n_covariates if i == 0 or inject_covariates).
    """

    def __init__(self, layers, n_input, n_covariates, inject_covariates=True,
                 *, weight_dtype=jnp.bfloat16, batch_tile=256):
        self.n_input = int(n_input)
        self.n_covariates = int(n_covariates)
        self.inject_covariates = bool(inject_covariates)
        self.batch_tile = int(batch_tile)
        self.w_dtype = weight_dtype

        n_layers = len(layers)
        d_mains, d_outs = [], []
        prev = self.n_input
        for i, (w, _, _) in enumerate(layers):
            d_out = int(w.shape[1])
            d_mains.append(prev)
            d_outs.append(d_out)
            injected = (i == 0) or self.inject_covariates
            expected_in = prev + (self.n_covariates if injected else 0)
            assert w.shape[0] == expected_in, (w.shape, expected_in)
            prev = d_out

        # Per-layer lane-dense padding (no uniform max width).
        d_in_pads = [_round_up(self.n_input, 128)] + \
                    [_round_up(d, 128) for d in d_outs[:-1]]
        d_out_pads = [_round_up(d, 128) for d in d_outs]
        d_cov = max(self.n_covariates, 1)        # dummy lane when n_cov == 0

        # Covariate weight columns only for layers that actually inject.
        cov_offsets = [0] * n_layers
        off = 0
        for i in range(n_layers):
            if i == 0 or self.inject_covariates:
                cov_offsets[i] = off
                off += d_out_pads[i]
        cov_width = off                          # layer 0 always injects

        wm_list, b_list, relus = [], [], []
        wc_all = jnp.zeros((d_cov, cov_width), weight_dtype)
        for i, (w, b, relu) in enumerate(layers):
            w = jnp.asarray(w)
            d_main, d_out = d_mains[i], d_outs[i]
            wm = jnp.zeros((d_in_pads[i], d_out_pads[i]), weight_dtype)
            wm = wm.at[:d_main, :d_out].set(w[:d_main, :].astype(weight_dtype))
            wm_list.append(wm)
            if (i == 0 or self.inject_covariates) and self.n_covariates > 0:
                wc_all = wc_all.at[
                    :self.n_covariates,
                    cov_offsets[i]:cov_offsets[i] + d_out].set(
                        w[d_main:, :].astype(weight_dtype))
            bb = jnp.zeros((1, d_out_pads[i]), jnp.float32)
            bb = bb.at[0, :d_out].set(
                jnp.asarray(b).reshape(-1).astype(jnp.float32))
            b_list.append(bb)
            relus.append(bool(relu))

        self.wm_list = tuple(wm_list)
        self.wc_all = wc_all
        self.b_list = tuple(b_list)
        self.relus = tuple(relus)
        self.d_in_pads = tuple(d_in_pads)
        self.d_out_pads = tuple(d_out_pads)
        self.cov_offsets = tuple(cov_offsets)
        self.cov_width = cov_width
        self.d_cov = d_cov
        self.d_out_last = d_outs[-1]
        self.n_layers = n_layers

        # jit so the split/pad of x fuses with its producer instead of being a
        # standalone HBM read+write every forward.
        self._forward = jax.jit(self._forward_impl)

    # ------------------------------------------------------------------ #

    def _batch_tiling(self, B):
        b8 = _round_up(B, 8)
        tb = max(8, min((self.batch_tile // 8) * 8, b8))  # multiple of 8
        n_tiles = _cdiv(b8, tb)
        if b8 > 8:
            n_tiles = max(n_tiles, 2)     # >=2 tiles => both TCs busy on v7x
        tb = _round_up(_cdiv(b8, n_tiles), 8)              # bound pad waste
        n_tiles = _cdiv(b8, tb)
        return tb, n_tiles * tb

    def _vmem_limit(self, tb, x_itemsize):
        wsize = jnp.dtype(self.w_dtype).itemsize
        resident = (sum(int(w.size) for w in self.wm_list) * wsize
                    + int(self.wc_all.size) * wsize
                    + sum(int(b.size) for b in self.b_list) * 4)
        act = 2 * tb * (self.d_in_pads[0] + self.d_cov
                        + self.d_out_pads[-1]) * x_itemsize
        scratch = tb * self.cov_width * 4 + 3 * tb * max(self.d_out_pads) * 4
        est = int(1.5 * (resident + act + scratch))
        # headroom: <= ~85% of physical VMEM (v7x: ~54 MiB), never above 100 MiB
        cap = min(int(_physical_vmem_bytes() * 0.85), 100 * 1024 * 1024)
        return int(min(max(est, 32 * 1024 * 1024), cap))

    def _forward_impl(self, x):
        B = x.shape[0]
        n_in, n_cov = self.n_input, self.n_covariates
        d_in0, d_cov = self.d_in_pads[0], self.d_cov
        d_out_last_pad = self.d_out_pads[-1]
        n_layers = self.n_layers

        tb, b_pad = self._batch_tiling(B)
        grid = (b_pad // tb,)

        # torch.split(x, [n_in, n_cov], dim=1), zero-padded & lane-dense.
        x_main = jnp.zeros((b_pad, d_in0), x.dtype).at[:B, :n_in].set(
            x[:, :n_in])
        x_cov = jnp.zeros((b_pad, d_cov), x.dtype)
        if n_cov > 0:
            x_cov = x_cov.at[:B, :n_cov].set(x[:, n_in:n_in + n_cov])

        const2 = lambda i: (0, 0)
        in_specs = [
            pl.BlockSpec((tb, d_in0), lambda i: (i, 0)),     # x_main tile
            pl.BlockSpec((tb, d_cov), lambda i: (i, 0)),     # x_cov tile
        ]
        in_specs += [_resident_spec(tuple(w.shape), const2)
                     for w in self.wm_list]                   # W_main (resident)
        in_specs.append(_resident_spec(tuple(self.wc_all.shape), const2))
        in_specs += [_resident_spec(tuple(b.shape), const2)
                     for b in self.b_list]                    # biases (resident)

        kernel = functools.partial(
            _fused_mlp_kernel, n_layers=n_layers, relus=self.relus,
            inject=self.inject_covariates, d_out_pads=self.d_out_pads,
            cov_offsets=self.cov_offsets)

        out = pl.pallas_call(
            kernel,
            out_shape=jax.ShapeDtypeStruct((b_pad, d_out_last_pad), x.dtype),
            grid_spec=pltpu.PrefetchScalarGridSpec(
                num_scalar_prefetch=0,
                grid=grid,
                in_specs=in_specs,
                out_specs=pl.BlockSpec((tb, d_out_last_pad),
                                       lambda i: (i, 0)),
                scratch_shapes=[pltpu.VMEM((tb, self.cov_width),
                                           jnp.float32)]),
            compiler_params=pltpu.CompilerParams(
                dimension_semantics=("parallel",),
                vmem_limit_bytes=self._vmem_limit(
                    tb, jnp.dtype(x.dtype).itemsize)),
        )(x_main, x_cov, *self.wm_list, self.wc_all, *self.b_list)

        return out[:B, :self.d_out_last]

    def __call__(self, x):
        return self._forward(x)


# --------------------------------- demo ------------------------------------


def _make_linear_params(key, d_in, d_out):
    kw, kb = jax.random.split(key)
    w = jax.random.normal(kw, (d_in, d_out), jnp.float32) / jnp.sqrt(d_in)
    b = jax.random.normal(kb, (1, d_out), jnp.float32) * 0.01
    return w, b


def _build_layers(key, n_input, n_cov, hidden, out_dim, inject):
    dims = []
    prev = n_input
    for li, h in enumerate(hidden + [out_dim]):
        d_in = prev + n_cov if (li == 0 or inject) else prev
        dims.append((d_in, h))
        prev = h
    keys = jax.random.split(key, len(dims))
    layers = []
    for li, (d_in, d_out) in enumerate(dims):
        w, b = _make_linear_params(keys[li], d_in, d_out)
        relu = li < len(dims) - 1              # ReLU on all but the last layer
        layers.append((w, b, relu))
    return layers


def _ref_forward(x, layers, n_input, n_cov, inject, w_dtype):
    # Matches the kernel's numerics: weights and matmul inputs quantized to
    # w_dtype (bf16 by default), accumulation in fp32.
    xm = x[:, :n_input].astype(jnp.float32)
    xc = x[:, n_input:n_input + n_cov].astype(jnp.float32)
    for i, (w, b, relu) in enumerate(layers):
        xin = jnp.concatenate([xm, xc], axis=1) if (i == 0 or inject) else xm
        xin = xin.astype(w_dtype).astype(jnp.float32)
        wf = jnp.asarray(w).astype(w_dtype).astype(jnp.float32)
        xm = jnp.dot(xin, wf, precision=jax.lax.Precision.HIGHEST) \
            + jnp.asarray(b, jnp.float32)
        if relu:
            xm = jnp.maximum(xm, 0.0)
    return xm


if __name__ == "__main__":
    key = jax.random.PRNGKey(0)
    k_layers_a, k_layers_b, kx = jax.random.split(key, 3)

    batch, n_input, n_cov = 16, 20, 4
    hidden, out_dim = [48, 24], 10

    x = jax.random.normal(kx, (batch, n_input + n_cov), jnp.float32)

    for inject, klay in ((True, k_layers_a), (False, k_layers_b)):
        layers = _build_layers(klay, n_input, n_cov, hidden, out_dim, inject)
        model = SequentialInject(layers, n_input, n_cov,
                                 inject_covariates=inject)
        y = jax.block_until_ready(model(x))

        y_ref = _ref_forward(x, layers, n_input, n_cov, inject, model.w_dtype)
        assert y.shape == (batch, out_dim), y.shape
        err = float(jnp.max(jnp.abs(y.astype(jnp.float32) - y_ref)))
        assert err < 1e-3, err

    print("KERNEL_OK")
</pallas_src>

<mosaic_0001>
module attributes {stable_mosaic.version = 11 : i64} {
  func.func @_fused_mlp_kernel(%arg0: i32, %arg1: memref<8x128xf32, #tpu.memory_space<vmem>>, %arg2: memref<8x4xf32, #tpu.memory_space<vmem>>, %arg3: memref<128x128xbf16, #tpu.memory_space<vmem>>, %arg4: memref<128x128xbf16, #tpu.memory_space<vmem>>, %arg5: memref<128x128xbf16, #tpu.memory_space<vmem>>, %arg6: memref<4x384xbf16, #tpu.memory_space<vmem>>, %arg7: memref<1x128xf32, #tpu.memory_space<vmem>>, %arg8: memref<1x128xf32, #tpu.memory_space<vmem>>, %arg9: memref<1x128xf32, #tpu.memory_space<vmem>>, %arg10: memref<8x128xf32, #tpu.memory_space<vmem>>, %arg11: memref<8x384xf32, #tpu.memory_space<vmem>>) attributes {dimension_semantics = [#tpu.dimension_semantics<parallel>], iteration_bounds = array<i64: 2>, scalar_prefetch = 0 : i64, scratch_operands = 1 : i64, tpu.core_type = #tpu.core_type<tc>, window_params = [{transform_indices = @transform_0, window_bounds = array<i64: 8, 128>}, {transform_indices = @transform_1, window_bounds = array<i64: 8, 4>}, {pipeline_mode = #tpu.pipeline_mode<synchronous>, transform_indices = @transform_2, window_bounds = array<i64: 128, 128>}, {pipeline_mode = #tpu.pipeline_mode<synchronous>, transform_indices = @transform_3, window_bounds = array<i64: 128, 128>}, {pipeline_mode = #tpu.pipeline_mode<synchronous>, transform_indices = @transform_4, window_bounds = array<i64: 128, 128>}, {pipeline_mode = #tpu.pipeline_mode<synchronous>, transform_indices = @transform_5, window_bounds = array<i64: 4, 384>}, {pipeline_mode = #tpu.pipeline_mode<synchronous>, transform_indices = @transform_6, window_bounds = array<i64: 1, 128>}, {pipeline_mode = #tpu.pipeline_mode<synchronous>, transform_indices = @transform_7, window_bounds = array<i64: 1, 128>}, {pipeline_mode = #tpu.pipeline_mode<synchronous>, transform_indices = @transform_8, window_bounds = array<i64: 1, 128>}, {transform_indices = @transform_9, window_bounds = array<i64: 8, 128>}]} {
    %c0 = arith.constant 0 : index
    %c0_0 = arith.constant 0 : index
    %0 = vector.load %arg2[%c0, %c0_0] : memref<8x4xf32, #tpu.memory_space<vmem>>, vector<8x4xf32>
    %1 = arith.truncf %0 : vector<8x4xf32> to vector<8x4xbf16>
    %c0_1 = arith.constant 0 : index
    %c0_2 = arith.constant 0 : index
    %2 = vector.load %arg6[%c0_1, %c0_2] : memref<4x384xbf16, #tpu.memory_space<vmem>>, vector<4x384xbf16>
    %cst = arith.constant dense<0.000000e+00> : vector<8x384xf32>
    %3 = tpu.matmul %1, %2, %cst {dimension_numbers = #tpu.dot_dimension_numbers<[1], [0], [0], [1], [0, 0, 1, 1], [], []>} : vector<8x4xbf16>, vector<4x384xbf16>, vector<8x384xf32> -> vector<8x384xf32>
    %c0_3 = arith.constant 0 : index
    %c0_4 = arith.constant 0 : index
    %4 = vector.load %arg11[%c0_3, %c0_4] : memref<8x384xf32, #tpu.memory_space<vmem>>, vector<8x384xf32>
    tpu.vector_store %arg11[%c0_3, %c0_4], %3 {strides = array<i32>} : memref<8x384xf32, #tpu.memory_space<vmem>>, vector<8x384xf32>,
    %c0_5 = arith.constant 0 : index
    %c0_6 = arith.constant 0 : index
    %5 = vector.load %arg1[%c0_5, %c0_6] : memref<8x128xf32, #tpu.memory_space<vmem>>, vector<8x128xf32>
    %6 = arith.truncf %5 : vector<8x128xf32> to vector<8x128xbf16>
    %c0_7 = arith.constant 0 : index
    %c0_8 = arith.constant 0 : index
    %7 = vector.load %arg3[%c0_7, %c0_8] : memref<128x128xbf16, #tpu.memory_space<vmem>>, vector<128x128xbf16>
    %cst_9 = arith.constant dense<0.000000e+00> : vector<8x128xf32>
    %8 = tpu.matmul %6, %7, %cst_9 {dimension_numbers = #tpu.dot_dimension_numbers<[1], [0], [0], [1], [0, 0, 1, 1], [], []>} : vector<8x128xbf16>, vector<128x128xbf16>, vector<8x128xf32> -> vector<8x128xf32>
    %c0_10 = arith.constant 0 : index
    %c0_11 = arith.constant 0 : index
    %9 = vector.load %arg11[%c0_10, %c0_11] : memref<8x384xf32, #tpu.memory_space<vmem>>, vector<8x128xf32>
    %10 = arith.addf %8, %9 : vector<8x128xf32>
    %c0_12 = arith.constant 0 : index
    %c0_13 = arith.constant 0 : index
    %11 = vector.load %arg7[%c0_12, %c0_13] : memref<1x128xf32, #tpu.memory_space<vmem>>, vector<1x128xf32>
    %12 = vector.broadcast %11 : vector<1x128xf32> to vector<8x128xf32>
    %13 = arith.addf %10, %12 : vector<8x128xf32>
    %cst_14 = arith.constant 0.000000e+00 : f32
    %14 = vector.broadcast %cst_14 : f32 to vector<8x128xf32>
    %15 = arith.maximumf %13, %14 : vector<8x128xf32>
    %16 = arith.truncf %15 : vector<8x128xf32> to vector<8x128xbf16>
    %c0_15 = arith.constant 0 : index
    %c0_16 = arith.constant 0 : index
    %17 = vector.load %arg4[%c0_15, %c0_16] : memref<128x128xbf16, #tpu.memory_space<vmem>>, vector<128x128xbf16>
    %cst_17 = arith.constant dense<0.000000e+00> : vector<8x128xf32>
    %18 = tpu.matmul %16, %17, %cst_17 {dimension_numbers = #tpu.dot_dimension_numbers<[1], [0], [0], [1], [0, 0, 1, 1], [], []>} : vector<8x128xbf16>, vector<128x128xbf16>, vector<8x128xf32> -> vector<8x128xf32>
    %c0_18 = arith.constant 0 : index
    %c128 = arith.constant 128 : index
    %19 = vector.load %arg11[%c0_18, %c128] : memref<8x384xf32, #tpu.memory_space<vmem>>, vector<8x128xf32>
    %20 = arith.addf %18, %19 : vector<8x128xf32>
    %c0_19 = arith.constant 0 : index
    %c0_20 = arith.constant 0 : index
    %21 = vector.load %arg8[%c0_19, %c0_20] : memref<1x128xf32, #tpu.memory_space<vmem>>, vector<1x128xf32>
    %22 = vector.broadcast %21 : vector<1x128xf32> to vector<8x128xf32>
    %23 = arith.addf %20, %22 : vector<8x128xf32>
    %cst_21 = arith.constant 0.000000e+00 : f32
    %24 = vector.broadcast %cst_21 : f32 to vector<8x128xf32>
    %25 = arith.maximumf %23, %24 : vector<8x128xf32>
    %26 = arith.truncf %25 : vector<8x128xf32> to vector<8x128xbf16>
    %c0_22 = arith.constant 0 : index
    %c0_23 = arith.constant 0 : index
    %27 = vector.load %arg5[%c0_22, %c0_23] : memref<128x128xbf16, #tpu.memory_space<vmem>>, vector<128x128xbf16>
    %cst_24 = arith.constant dense<0.000000e+00> : vector<8x128xf32>
    %28 = tpu.matmul %26, %27, %cst_24 {dimension_numbers = #tpu.dot_dimension_numbers<[1], [0], [0], [1], [0, 0, 1, 1], [], []>} : vector<8x128xbf16>, vector<128x128xbf16>, vector<8x128xf32> -> vector<8x128xf32>
    %c0_25 = arith.constant 0 : index
    %c256 = arith.constant 256 : index
    %29 = vector.load %arg11[%c0_25, %c256] : memref<8x384xf32, #tpu.memory_space<vmem>>, vector<8x128xf32>
    %30 = arith.addf %28, %29 : vector<8x128xf32>
    %c0_26 = arith.constant 0 : index
    %c0_27 = arith.constant 0 : index
    %31 = vector.load %arg9[%c0_26, %c0_27] : memref<1x128xf32, #tpu.memory_space<vmem>>, vector<1x128xf32>
    %32 = vector.broadcast %31 : vector<1x128xf32> to vector<8x128xf32>
    %33 = arith.addf %30, %32 : vector<8x128xf32>
    %c0_28 = arith.constant 0 : index
    %c0_29 = arith.constant 0 : index
    %34 = vector.load %arg10[%c0_28, %c0_29] : memref<8x128xf32, #tpu.memory_space<vmem>>, vector<8x128xf32>
    tpu.vector_store %arg10[%c0_28, %c0_29], %33 {strides = array<i32>} : memref<8x128xf32, #tpu.memory_space<vmem>>, vector<8x128xf32>,
    return
  }
  func.func @transform_0(%arg0: i32) -> (i32, i32) {
    %c0_i32 = arith.constant 0 : i32
    %c0_i32_0 = arith.constant 0 : i32
    return %arg0, %c0_i32 : i32, i32
  }
  func.func @transform_1(%arg0: i32) -> (i32, i32) {
    %c0_i32 = arith.constant 0 : i32
    %c0_i32_0 = arith.constant 0 : i32
    return %arg0, %c0_i32 : i32, i32
  }
  func.func @transform_2(%arg0: i32) -> (i32, i32) {
    %c0_i32 = arith.constant 0 : i32
    %c0_i32_0 = arith.constant 0 : i32
    %c0_i32_1 = arith.constant 0 : i32
    return %c0_i32, %c0_i32_0 : i32, i32
  }
  func.func @transform_3(%arg0: i32) -> (i32, i32) {
    %c0_i32 = arith.constant 0 : i32
    %c0_i32_0 = arith.constant 0 : i32
    %c0_i32_1 = arith.constant 0 : i32
    return %c0_i32, %c0_i32_0 : i32, i32
  }
  func.func @transform_4(%arg0: i32) -> (i32, i32) {
    %c0_i32 = arith.constant 0 : i32
    %c0_i32_0 = arith.constant 0 : i32
    %c0_i32_1 = arith.constant 0 : i32
    return %c0_i32, %c0_i32_0 : i32, i32
  }
  func.func @transform_5(%arg0: i32) -> (i32, i32) {
    %c0_i32 = arith.constant 0 : i32
    %c0_i32_0 = arith.constant 0 : i32
    %c0_i32_1 = arith.constant 0 : i32
    return %c0_i32, %c0_i32_0 : i32, i32
  }
  func.func @transform_6(%arg0: i32) -> (i32, i32) {
    %c0_i32 = arith.constant 0 : i32
    %c0_i32_0 = arith.constant 0 : i32
    %c0_i32_1 = arith.constant 0 : i32
    return %c0_i32, %c0_i32_0 : i32, i32
  }
  func.func @transform_7(%arg0: i32) -> (i32, i32) {
    %c0_i32 = arith.constant 0 : i32
    %c0_i32_0 = arith.constant 0 : i32
    %c0_i32_1 = arith.constant 0 : i32
    return %c0_i32, %c0_i32_0 : i32, i32
  }
  func.func @transform_8(%arg0: i32) -> (i32, i32) {
    %c0_i32 = arith.constant 0 : i32
    %c0_i32_0 = arith.constant 0 : i32
    %c0_i32_1 = arith.constant 0 : i32
    return %c0_i32, %c0_i32_0 : i32, i32
  }
  func.func @transform_9(%arg0: i32) -> (i32, i32) {
    %c0_i32 = arith.constant 0 : i32
    %c0_i32_0 = arith.constant 0 : i32
    return %arg0, %c0_i32 : i32, i32
  }
}

</mosaic_0001>

<llo_original>
// kernel: _forward_impl.1
$region0: #{_forward_impl.1}
  #allocation0 [shape = 'u32[]', space=smem, size = 0x4, offset = 0x4, fixed_abs, tag = 'smem constant byte address 0x4 - core index']
  #allocation1 [shape = 'u32[72,128]{1,0:T(1,128)}', space=vmem, size = 0x9000, scoped, tag = 'internal scratch']
  #allocation2 [shape = 'f32[8,384]{1,0:T(8,128)}', space=vmem, size = 0x3000, scoped, tag = 'scratch operand']
  %s0 = inlined_call_operand.vmem [shape: f32[16,128], index: 0, kind: input, shape index: {}]
  %s1 = inlined_call_operand.vmem [shape: f32[16,4], index: 1, kind: input, shape index: {}]
  %s2 = inlined_call_operand.hbm [shape: bf16[128,128], index: 2, kind: input, shape index: {}]
  %s3 = inlined_call_operand.hbm [shape: bf16[128,128], index: 3, kind: input, shape index: {}]
  %s4 = inlined_call_operand.hbm [shape: bf16[128,128], index: 4, kind: input, shape index: {}]
  %s5 = inlined_call_operand.vmem [shape: bf16[4,384], index: 5, kind: input, shape index: {}]
  %s6 = inlined_call_operand.vmem [shape: f32[1,128], index: 6, kind: input, shape index: {}]
  %s7 = inlined_call_operand.vmem [shape: f32[1,128], index: 7, kind: input, shape index: {}]
  %s8 = inlined_call_operand.vmem [shape: f32[1,128], index: 8, kind: input, shape index: {}]
  %s9 = inlined_call_operand.hbm [shape: f32[16,128], index: 9, kind: output, shape index: {}]
  %s10 = sld [smem:[#allocation0]]
  $region81: #{_forward_impl.1} parent=0
    _
  %s12 = ssub.s32 1, %s10
  %s13 = scalar_select 0, %s12, %s10
  $region1: #{_forward_impl.1} parent=0
    #allocation3 [shape = 'u8[32768]{0}', space=vmem, size = 0x8000, scoped, tag = 'input window, operand 2, single buffered']
    #allocation4 [shape = 's32[2]{0}', space=sflag, size = 0x8, scoped, tag = 'scoped memory for _forward_impl.1']
    #allocation5 [shape = 's32[2]{0}', space=sflag, size = 0x8, scoped, tag = 'scoped memory for _forward_impl.1']
    #allocation6 [shape = 'u8[32768]{0}', space=vmem, size = 0x8000, scoped, tag = 'input window, operand 3, single buffered']
    #allocation7 [shape = 's32[1]{0}', space=sflag, size = 0x4, scoped, tag = 'scoped memory for _forward_impl.1']
    #allocation8 [shape = 'u8[32768]{0}', space=vmem, size = 0x8000, scoped, tag = 'input window, operand 4, single buffered']
    #allocation9 [shape = 'u8[8192]{0}', space=vmem, size = 0x2000, scoped, tag = 'output window, operand 0']
    %14 = vsyncpa [#allocation4], 0
    %15 = vsyncpa [#allocation7], 0
    %16 = vsyncpa [#allocation5], 0
    %s17 = scalar_lea.sflag [#allocation5], 1
    %18 = vsyncpa %s17, 0
    loop: start=0, step=1, limit=4
    $region2: #{_forward_impl.1} parent=1 // loop_pre_header
      _
    $region3: #{_forward_impl.1} parent=1 // loop_header
      %s20 = sphi 0, %s24
      %p21 = scmp.ge.s32.totalorder %s20, 4
      %s30 = sphi 0, %s32
      %s33 = sphi 0, %s30
      %s34 = sphi 0, %s33
      %s50 = sphi 0, %s34
      %s56 = sphi 0, %s58
      %s59 = sphi 0, %s56
      %s60 = sphi 0, %s59
      %s76 = sphi 0, %s60
      %s80 = sphi 0, %s80
      %s82 = sphi 0, %s80
      %s83 = sphi 0, %s82
      %s97 = sphi 0, %s83
      %s101 = sphi 0, %s101
      %s103 = sphi 0, %s101
      %s104 = sphi 0, %s103
      %s118 = sphi 0, %s104
      %s122 = sphi 0, %s122
      %s124 = sphi 0, %s122
      %s125 = sphi 0, %s124
      %s139 = sphi 0, %s125
      %s143 = sphi 0, %s143
      %s145 = sphi 0, %s143
      %s146 = sphi 0, %s145
      %s160 = sphi 0, %s146
      %s164 = sphi 0, %s164
      %s166 = sphi 0, %s164
      %s167 = sphi 0, %s166
      %s181 = sphi 0, %s167
      %s185 = sphi 0, %s185
      %s187 = sphi 0, %s185
      %s188 = sphi 0, %s187
      %s202 = sphi 0, %s188
      %s206 = sphi 0, %s206
      %s208 = sphi 0, %s206
      %s209 = sphi 0, %s208
      %s223 = sphi 0, %s209
      %s229 = sphi 0, %s231
      %s232 = sphi 0, %s229
      %s233 = sphi 0, %s232
      %s249 = sphi 0, %s233
    $region4: #{_forward_impl.1} parent=1 // loop_header_branch
      %23 = sbr.rel (%p21) target = $region8
    $region5: #{_forward_impl.1} parent=1 // loop_body
      %s25 = ssub.s32 %s20, 1
      %s26 = ssub.s32 %s20, 2
      %s27 = sadd.s32 %s20, 1
      %s28 = ssub.s32 %s20, %s27
      %p29 = scmp.eq.s32.totalorder %s28, 0
      %s31 = sadd.s32 %s30, 1
      %s32 = scalar_select %p29, %s30, %s31
      %p35 = pneg %p29
      %p36 = scmp.eq.s32.totalorder %s20, 1
      %p37 = por %p35, %p36
      %p38 = scmp.ne.s32.totalorder %s30, %s33
      %p39 = scmp.eq.s32.totalorder %s20, 0
      %p40 = por %p38, %p39
      %p41 = scmp.ne.s32.totalorder %s30, %s33
      %p42 = scmp.eq.s32.totalorder %s25, 1
      %p43 = por %p41, %p42
      %p44 = scmp.ne.s32.totalorder %s33, %s34
      %p45 = scmp.eq.s32.totalorder %s25, 0
      %p46 = por %p44, %p45
      %p47 = scmp.ne.s32.totalorder %s33, %s34
      %p48 = scmp.eq.s32.totalorder %s26, 1
      %p49 = por %p47, %p48
      %p51 = scmp.ne.s32.totalorder %s34, %s50
      %p52 = scmp.eq.s32.totalorder %s26, 0
      %p53 = por %p51, %p52
      %s54 = ssub.s32 %s20, %s27
      %p55 = scmp.eq.s32.totalorder %s54, 0
      %s57 = sadd.s32 %s56, 1
      %s58 = scalar_select %p55, %s56, %s57
      %p61 = pneg %p55
      %p62 = scmp.eq.s32.totalorder %s20, 1
      %p63 = por %p61, %p62
      %p64 = scmp.ne.s32.totalorder %s56, %s59
      %p65 = scmp.eq.s32.totalorder %s20, 0
      %p66 = por %p64, %p65
      %p67 = scmp.ne.s32.totalorder %s56, %s59
      %p68 = scmp.eq.s32.totalorder %s25, 1
      %p69 = por %p67, %p68
      %p70 = scmp.ne.s32.totalorder %s59, %s60
      %p71 = scmp.eq.s32.totalorder %s25, 0
      %p72 = por %p70, %p71
      %p73 = scmp.ne.s32.totalorder %s59, %s60
      %p74 = scmp.eq.s32.totalorder %s26, 1
      %p75 = por %p73, %p74
      %p77 = scmp.ne.s32.totalorder %s60, %s76
      %p78 = scmp.eq.s32.totalorder %s26, 0
      %p79 = por %p77, %p78
      %s81 = sadd.s32 %s80, 1
      %p84 = scmp.eq.s32.totalorder %s20, 1
      %p85 = scmp.ne.s32.totalorder %s80, %s82
      %p86 = scmp.eq.s32.totalorder %s20, 0
      %p87 = por %p85, %p86
      %p88 = scmp.ne.s32.totalorder %s80, %s82
      %p89 = scmp.eq.s32.totalorder %s25, 1
      %p90 = por %p88, %p89
      %p91 = scmp.ne.s32.totalorder %s82, %s83
      %p92 = scmp.eq.s32.totalorder %s25, 0
      %p93 = por %p91, %p92
      %p94 = scmp.ne.s32.totalorder %s82, %s83
      %p95 = scmp.eq.s32.totalorder %s26, 1
      %p96 = por %p94, %p95
      %p98 = scmp.ne.s32.totalorder %s83, %s97
      %p99 = scmp.eq.s32.totalorder %s26, 0
      %p100 = por %p98, %p99
      %s102 = sadd.s32 %s101, 1
      %p105 = scmp.eq.s32.totalorder %s20, 1
      %p106 = scmp.ne.s32.totalorder %s101, %s103
      %p107 = scmp.eq.s32.totalorder %s20, 0
      %p108 = por %p106, %p107
      %p109 = scmp.ne.s32.totalorder %s101, %s103
      %p110 = scmp.eq.s32.totalorder %s25, 1
      %p111 = por %p109, %p110
      %p112 = scmp.ne.s32.totalorder %s103, %s104
      %p113 = scmp.eq.s32.totalorder %s25, 0
      %p114 = por %p112, %p113
      %p115 = scmp.ne.s32.totalorder %s103, %s104
      %p116 = scmp.eq.s32.totalorder %s26, 1
      %p117 = por %p115, %p116
      %p119 = scmp.ne.s32.totalorder %s104, %s118
      %p120 = scmp.eq.s32.totalorder %s26, 0
      %p121 = por %p119, %p120
      %s123 = sadd.s32 %s122, 1
      %p126 = scmp.eq.s32.totalorder %s20, 1
      %p127 = scmp.ne.s32.totalorder %s122, %s124
      %p128 = scmp.eq.s32.totalorder %s20, 0
      %p129 = por %p127, %p128
      %p130 = scmp.ne.s32.totalorder %s122, %s124
      %p131 = scmp.eq.s32.totalorder %s25, 1
      %p132 = por %p130, %p131
      %p133 = scmp.ne.s32.totalorder %s124, %s125
      %p134 = scmp.eq.s32.totalorder %s25, 0
      %p135 = por %p133, %p134
      %p136 = scmp.ne.s32.totalorder %s124, %s125
      %p137 = scmp.eq.s32.totalorder %s26, 1
      %p138 = por %p136, %p137
      %p140 = scmp.ne.s32.totalorder %s125, %s139
      %p141 = scmp.eq.s32.totalorder %s26, 0
      %p142 = por %p140, %p141
      %s144 = sadd.s32 %s143, 1
      %p147 = scmp.eq.s32.totalorder %s20, 1
      %p148 = scmp.ne.s32.totalorder %s143, %s145
      %p149 = scmp.eq.s32.totalorder %s20, 0
      %p150 = por %p148, %p149
      %p151 = scmp.ne.s32.totalorder %s143, %s145
      %p152 = scmp.eq.s32.totalorder %s25, 1
      %p153 = por %p151, %p152
      %p154 = scmp.ne.s32.totalorder %s145, %s146
      %p155 = scmp.eq.s32.totalorder %s25, 0
      %p156 = por %p154, %p155
      %p157 = scmp.ne.s32.totalorder %s145, %s146
      %p158 = scmp.eq.s32.totalorder %s26, 1
      %p159 = por %p157, %p158
      %p161 = scmp.ne.s32.totalorder %s146, %s160
      %p162 = scmp.eq.s32.totalorder %s26, 0
      %p163 = por %p161, %p162
      %s165 = sadd.s32 %s164, 1
      %p168 = scmp.eq.s32.totalorder %s20, 1
      %p169 = scmp.ne.s32.totalorder %s164, %s166
      %p170 = scmp.eq.s32.totalorder %s20, 0
      %p171 = por %p169, %p170
      %p172 = scmp.ne.s32.totalorder %s164, %s166
      %p173 = scmp.eq.s32.totalorder %s25, 1
      %p174 = por %p172, %p173
      %p175 = scmp.ne.s32.totalorder %s166, %s167
      %p176 = scmp.eq.s32.totalorder %s25, 0
      %p177 = por %p175, %p176
      %p178 = scmp.ne.s32.totalorder %s166, %s167
      %p179 = scmp.eq.s32.totalorder %s26, 1
      %p180 = por %p178, %p179
      %p182 = scmp.ne.s32.totalorder %s167, %s181
      %p183 = scmp.eq.s32.totalorder %s26, 0
      %p184 = por %p182, %p183
      %s186 = sadd.s32 %s185, 1
      %p189 = scmp.eq.s32.totalorder %s20, 1
      %p190 = scmp.ne.s32.totalorder %s185, %s187
      %p191 = scmp.eq.s32.totalorder %s20, 0
      %p192 = por %p190, %p191
      %p193 = scmp.ne.s32.totalorder %s185, %s187
      %p194 = scmp.eq.s32.totalorder %s25, 1
      %p195 = por %p193, %p194
      %p196 = scmp.ne.s32.totalorder %s187, %s188
      %p197 = scmp.eq.s32.totalorder %s25, 0
      %p198 = por %p196, %p197
      %p199 = scmp.ne.s32.totalorder %s187, %s188
      %p200 = scmp.eq.s32.totalorder %s26, 1
      %p201 = por %p199, %p200
      %p203 = scmp.ne.s32.totalorder %s188, %s202
      %p204 = scmp.eq.s32.totalorder %s26, 0
      %p205 = por %p203, %p204
      %s207 = sadd.s32 %s206, 1
      %p210 = scmp.eq.s32.totalorder %s20, 1
      %p211 = scmp.ne.s32.totalorder %s206, %s208
      %p212 = scmp.eq.s32.totalorder %s20, 0
      %p213 = por %p211, %p212
      %p214 = scmp.ne.s32.totalorder %s206, %s208
      %p215 = scmp.eq.s32.totalorder %s25, 1
      %p216 = por %p214, %p215
      %p217 = scmp.ne.s32.totalorder %s208, %s209
      %p218 = scmp.eq.s32.totalorder %s25, 0
      %p219 = por %p217, %p218
      %p220 = scmp.ne.s32.totalorder %s208, %s209
      %p221 = scmp.eq.s32.totalorder %s26, 1
      %p222 = por %p220, %p221
      %p224 = scmp.ne.s32.totalorder %s209, %s223
      %p225 = scmp.eq.s32.totalorder %s26, 0
      %p226 = por %p224, %p225
      %s227 = ssub.s32 %s20, %s27
      %p228 = scmp.eq.s32.totalorder %s227, 0
      %s230 = sadd.s32 %s229, 1
      %s231 = scalar_select %p228, %s229, %s230
      %p234 = pneg %p228
      %p235 = scmp.eq.s32.totalorder %s20, 1
      %p236 = por %p234, %p235
      %p237 = scmp.ne.s32.totalorder %s229, %s232
      %p238 = scmp.eq.s32.totalorder %s20, 0
      %p239 = por %p237, %p238
      %p240 = scmp.ne.s32.totalorder %s229, %s232
      %p241 = scmp.eq.s32.totalorder %s25, 1
      %p242 = por %p240, %p241
      %p243 = scmp.ne.s32.totalorder %s232, %s233
      %p244 = scmp.eq.s32.totalorder %s25, 0
      %p245 = por %p243, %p244
      %p246 = scmp.ne.s32.totalorder %s232, %s233
      %p247 = scmp.eq.s32.totalorder %s26, 1
      %p248 = por %p246, %p247
      %p250 = scmp.ne.s32.totalorder %s233, %s249
      %p251 = scmp.eq.s32.totalorder %s26, 0
      %p252 = por %p250, %p251
      %p253 = scmp.le.s32.totalorder 1, %s20
      %p254 = scmp.lt.s32.totalorder %s20, 3
      %p255 = pnand %p253, %p254
      %p256 = pneg %p255
      // Predicated region
      $region9: #{_forward_impl.1} parent=5 // pred_check
        _
      $region10: #{_forward_impl.1} parent=5 // pred_check_branch
        %258 = sbr.rel (%p255) target = $region12
      $region11: #{_forward_impl.1} parent=5 // pred_region
        %s259 = ssub.s32 %s20, 1
        // Predicated region
        $region13: #{_forward_impl.1} parent=11 // pred_check
          %p260 = pneg %p93
        $region14: #{_forward_impl.1} parent=11 // pred_check_branch
          %262 = sbr.rel (%p260) target = $region16
        $region15: #{_forward_impl.1} parent=11 // pred_region
          %264 = vsyncadd [#allocation4], 0
          %s265 = sshll.u32 %s2, 4
          %s266 = int_to_ptr.hbm [resolvable:$true] %s265
          %s267 = sshll.u32 [#allocation3], 4
          %s268 = int_to_ptr.vmem [resolvable:$true] %s267
          %273 = dma.hbm_to_vmem [thread:$0]  %s266, 1024, %s268, [#allocation4], 64, 64, 4
        $region16: #{_forward_impl.1} parent=11 // pred_fallthru
          _
        // Predicated region
        $region17: #{_forward_impl.1} parent=11 // pred_check
          %p274 = pneg %p114
        $region18: #{_forward_impl.1} parent=11 // pred_check_branch
          %276 = sbr.rel (%p274) target = $region20
        $region19: #{_forward_impl.1} parent=11 // pred_region
          %278 = vsyncadd [#allocation7], 0
          %s279 = sshll.u32 %s3, 4
          %s280 = int_to_ptr.hbm [resolvable:$true] %s279
          %s281 = sshll.u32 [#allocation6], 4
          %s282 = int_to_ptr.vmem [resolvable:$true] %s281
          %287 = dma.hbm_to_vmem [thread:$0]  %s280, 1024, %s282, [#allocation7], 64, 64, 4
        $region20: #{_forward_impl.1} parent=11 // pred_fallthru
          _
        // Predicated region
        $region21: #{_forward_impl.1} parent=11 // pred_check
          %p288 = pneg %p135
        $region22: #{_forward_impl.1} parent=11 // pred_check_branch
          %290 = sbr.rel (%p288) target = $region24
        $region23: #{_forward_impl.1} parent=11 // pred_region
          %292 = vsyncadd [#allocation7], 0
          %s293 = sshll.u32 %s4, 4
          %s294 = int_to_ptr.hbm [resolvable:$true] %s293
          %s295 = sshll.u32 [#allocation8], 4
          %s296 = int_to_ptr.vmem [resolvable:$true] %s295
          %301 = dma.hbm_to_vmem [thread:$0]  %s294, 1024, %s296, [#allocation7], 64, 64, 4
        $region24: #{_forward_impl.1} parent=11 // pred_fallthru
          _
        // Predicated region
        $region25: #{_forward_impl.1} parent=11 // pred_check
          %p302 = pneg %p156
        $region26: #{_forward_impl.1} parent=11 // pred_check_branch
          %304 = sbr.rel (%p302) target = $region28
        $region27: #{_forward_impl.1} parent=11 // pred_region
          _
        $region28: #{_forward_impl.1} parent=11 // pred_fallthru
          _
        // Predicated region
        $region29: #{_forward_impl.1} parent=11 // pred_check
          %p305 = pneg %p177
        $region30: #{_forward_impl.1} parent=11 // pred_check_branch
          %307 = sbr.rel (%p305) target = $region32
        $region31: #{_forward_impl.1} parent=11 // pred_region
          _
        $region32: #{_forward_impl.1} parent=11 // pred_fallthru
          _
        // Predicated region
        $region33: #{_forward_impl.1} parent=11 // pred_check
          %p308 = pneg %p198
        $region34: #{_forward_impl.1} parent=11 // pred_check_branch
          %310 = sbr.rel (%p308) target = $region36
        $region35: #{_forward_impl.1} parent=11 // pred_region
          _
        $region36: #{_forward_impl.1} parent=11 // pred_fallthru
          _
        // Predicated region
        $region37: #{_forward_impl.1} parent=11 // pred_check
          %p311 = pneg %p219
        $region38: #{_forward_impl.1} parent=11 // pred_check_branch
          %313 = sbr.rel (%p311) target = $region40
        $region39: #{_forward_impl.1} parent=11 // pred_region
          _
        $region40: #{_forward_impl.1} parent=11 // pred_fallthru
          _
      $region12: #{_forward_impl.1} parent=5 // pred_fallthru
        _
      %p314 = scmp.lt.s32.totalorder %s20, 2
      // Predicated region
      $region41: #{_forward_impl.1} parent=5 // pred_check
        %p315 = pneg %p314
      $region42: #{_forward_impl.1} parent=5 // pred_check_branch
        %317 = sbr.rel (%p315) target = $region44
      $region43: #{_forward_impl.1} parent=5 // pred_region
        // Predicated region
        $region45: #{_forward_impl.1} parent=43 // pred_check
          %p318 = pneg %p40
        $region46: #{_forward_impl.1} parent=43 // pred_check_branch
          %320 = sbr.rel (%p318) target = $region48
        $region47: #{_forward_impl.1} parent=43 // pred_region
          %p321 = scmp.lt.s32.totalorder %s20, 1
          %s322 = scalar_select %p321, %s20, 1
          %s323 = smul.addr %s322, 8
          %s324 = scalar_lea.vmem %s0, %s323
        $region48: #{_forward_impl.1} parent=43 // pred_fallthru
          _
        // Predicated region
        $region49: #{_forward_impl.1} parent=43 // pred_check
          %p325 = pneg %p66
        $region50: #{_forward_impl.1} parent=43 // pred_check_branch
          %327 = sbr.rel (%p325) target = $region52
        $region51: #{_forward_impl.1} parent=43 // pred_region
          %p328 = scmp.lt.s32.totalorder %s20, 1
          %s329 = scalar_select %p328, %s20, 1
          %s330 = smul.addr %s329, 8
          %s331 = scalar_lea.vmem %s1, %s330
        $region52: #{_forward_impl.1} parent=43 // pred_fallthru
          _
      $region44: #{_forward_impl.1} parent=5 // pred_fallthru
        _
      %p332 = scmp.le.s32.totalorder 1, %s20
      %p333 = scmp.lt.s32.totalorder %s20, 3
      %p334 = pnand %p332, %p333
      %p335 = pneg %p334
      // Predicated region
      $region53: #{_forward_impl.1} parent=5 // pred_check
        _
      $region54: #{_forward_impl.1} parent=5 // pred_check_branch
        %337 = sbr.rel (%p334) target = $region56
      $region55: #{_forward_impl.1} parent=5 // pred_region
        %s338 = ssub.s32 %s20, 1
        // Predicated region
        $region57: #{_forward_impl.1} parent=55 // pred_check
          %p339 = pneg %p93
        $region58: #{_forward_impl.1} parent=55 // pred_check_branch
          %341 = sbr.rel (%p339) target = $region60
        $region59: #{_forward_impl.1} parent=55 // pred_region
          %343 = dma.done [#allocation4], 1024
        $region60: #{_forward_impl.1} parent=55 // pred_fallthru
          _
        // Predicated region
        $region61: #{_forward_impl.1} parent=55 // pred_check
          %p344 = pneg %p114
        $region62: #{_forward_impl.1} parent=55 // pred_check_branch
          %346 = sbr.rel (%p344) target = $region64
        $region63: #{_forward_impl.1} parent=55 // pred_region
          %348 = dma.done [#allocation7], 1024
        $region64: #{_forward_impl.1} parent=55 // pred_fallthru
          _
        // Predicated region
        $region65: #{_forward_impl.1} parent=55 // pred_check
          %p349 = pneg %p135
        $region66: #{_forward_impl.1} parent=55 // pred_check_branch
          %351 = sbr.rel (%p349) target = $region68
        $region67: #{_forward_impl.1} parent=55 // pred_region
          %353 = dma.done [#allocation7], 1024
        $region68: #{_forward_impl.1} parent=55 // pred_fallthru
          _
        %p354 = scmp.lt.s32.totalorder %s25, 1
        %s355 = scalar_select %p354, %s25, 1
        %s356 = smul.addr %s355, 8
        %s357 = scalar_lea.vmem %s0, %s356
        %p358 = pneg %p46
        %p359 = pneg %p43
        %p360 = scmp.lt.s32.totalorder %s25, 1
        %s361 = scalar_select %p360, %s25, 1
        %s362 = smul.addr %s361, 8
        %s363 = scalar_lea.vmem %s1, %s362
        %p364 = pneg %p72
        %p365 = pneg %p69
        %p366 = pneg %p93
        %p367 = pneg %p90
        %p368 = pneg %p114
        %p369 = pneg %p111
        %p370 = pneg %p135
        %p371 = pneg %p132
        %p372 = pneg %p156
        %p373 = pneg %p153
        %p374 = pneg %p177
        %p375 = pneg %p174
        %p376 = pneg %p198
        %p377 = pneg %p195
        %p378 = pneg %p219
        %p379 = pneg %p216
        %p380 = pneg %p245
        %p381 = pneg %p242
        %s382 = sand.u32 %s232, 1
        %s383 = scalar_lea.sflag [#allocation5], %s382
        %s384 = sand.u32 %s232, 1
        %s385 = smul.addr %s384, 8
        %s386 = scalar_lea.vmem [#allocation9], %s385
        %p387 = scmp.lt.s32.totalorder %s25, 1
        %s388 = scalar_select %p387, %s25, 1
        %s389 = smul.addr %s388, 8
        %s390 = scalar_lea.vmem %s0, %s389
        %p391 = scmp.lt.s32.totalorder %s25, 1
        %s392 = scalar_select %p391, %s25, 1
        %s393 = smul.addr %s392, 8
        %s394 = scalar_lea.vmem %s1, %s393
        %v396 = vld [vmem:[%s394] sm:$0xff]
        %v397 = vpack.c.bf16 %v396, %v396
        %v398 = vld [vmem:[%s5] sm:$0x3f]
        %400 = vst [vmem:[#allocation1] ss:$4 sm:$0xff] %v398
        %v401 = vld.sshfl [vmem:[#allocation1] sm:$0xff pattern:$0x73625140]
        %v402 = vld.sshfl [vmem:[#allocation1 + $0x8] sm:$0xff pattern:$0x73625140]
        %v403 = vld.sshfl [vmem:[#allocation1 + $0x10] sm:$0xff pattern:$0x73625140]
        %vm404 = vcmask 31744
        %v406 = vsel %vm404, %v397, 0
        %vm408 = vcmask 1041408
        %v409 = vsel %vm408, %v401, 0
        %v411 = vsel %vm408, %v402, 0
        %v413 = vsel %vm408, %v403, 0
        %415 = vmatpush.bf16.msra.mxu0 0
        %416 = vmatpush.bf16.msra.mxu0 0
        %417 = vmatpush.bf16.msra.mxu0 0
        %418 = vmatpush.bf16.msra.mxu0 0
        %419 = vmatpush.bf16.msra.mxu0 0
        %420 = vmatpush.bf16.msra.mxu0 0
        %421 = vmatpush.bf16.msra.mxu0 0
        %422 = vmatpush.bf16.msra.mxu0 %v409
        %423 = vmatmul.bf16.gmra.mxu0 %v406
        %v424 = vpop.f32.mrf.mxu0
        %v425 = vadd.f32 0.0, %v424
        %v426 = vpop.f32.mrf.mxu0
        %427 = vdwg.mxu0
        %428 = vmatpush.bf16.msra.mxu0 0
        %429 = vmatpush.bf16.msra.mxu0 0
        %430 = vmatpush.bf16.msra.mxu0 0
        %431 = vmatpush.bf16.msra.mxu0 0
        %432 = vmatpush.bf16.msra.mxu0 0
        %433 = vmatpush.bf16.msra.mxu0 0
        %434 = vmatpush.bf16.msra.mxu0 0
        %435 = vmatpush.bf16.msra.mxu0 %v411
        %436 = vmatmul.bf16.gmra.mxu0 %v406
        %v437 = vpop.f32.mrf.mxu0
        %v438 = vadd.f32 0.0, %v437
        %v439 = vpop.f32.mrf.mxu0
        %440 = vdwg.mxu0
        %441 = vmatpush.bf16.msra.mxu0 0
        %442 = vmatpush.bf16.msra.mxu0 0
        %443 = vmatpush.bf16.msra.mxu0 0
        %444 = vmatpush.bf16.msra.mxu0 0
        %445 = vmatpush.bf16.msra.mxu0 0
        %446 = vmatpush.bf16.msra.mxu0 0
        %447 = vmatpush.bf16.msra.mxu0 0
        %448 = vmatpush.bf16.msra.mxu0 %v413
        %449 = vmatmul.bf16.gmra.mxu0 %v406
        %v450 = vpop.f32.mrf.mxu0
        %v451 = vadd.f32 0.0, %v450
        %v452 = vpop.f32.mrf.mxu0
        %453 = vdwg.mxu0
        %454 = vst [vmem:[#allocation2] sm:$0xff] %v425
        %455 = vst [vmem:[#allocation2 + $0x8] sm:$0xff] %v438
        %456 = vst [vmem:[#allocation2 + $0x10] sm:$0xff] %v451
        %v457 = vld [vmem:[%s390] sm:$0xff]
        %v458 = vpack.c.bf16 %v457, %v457
        %v459 = vld [vmem:[#allocation3] sm:$0xf]
        %v460 = vld [vmem:[#allocation3 + $0x4] sm:$0xf]
        %v461 = vld [vmem:[#allocation3 + $0x8] sm:$0xf]
        %v462 = vld [vmem:[#allocation3 + $0xc] sm:$0xf]
        %v463 = vld [vmem:[#allocation3 + $0x10] sm:$0xf]
        %v464 = vld [vmem:[#allocation3 + $0x14] sm:$0xf]
        %v465 = vld [vmem:[#allocation3 + $0x18] sm:$0xf]
        %v466 = vld [vmem:[#allocation3 + $0x1c] sm:$0xf]
        %v467 = vld [vmem:[#allocation3 + $0x20] sm:$0xf]
        %v468 = vld [vmem:[#allocation3 + $0x24] sm:$0xf]
        %v469 = vld [vmem:[#allocation3 + $0x28] sm:$0xf]
        %v470 = vld [vmem:[#allocation3 + $0x2c] sm:$0xf]
        %v471 = vld [vmem:[#allocation3 + $0x30] sm:$0xf]
        %v472 = vld [vmem:[#allocation3 + $0x34] sm:$0xf]
        %v473 = vld [vmem:[#allocation3 + $0x38] sm:$0xf]
        %v474 = vld [vmem:[#allocation3 + $0x3c] sm:$0xf]
        %v475 = vld [vmem:[#allocation2] sm:$0xff]
        %v492 = vunpack.c.l.b16 %v459
        %v493 = vunpack.c.l.b16 %v460
        %v494 = vunpack.c.l.b16 %v461
        %v495 = vunpack.c.l.b16 %v462
        %v496 = vunpack.c.l.b16 %v463
        %v497 = vunpack.c.l.b16 %v464
        %v498 = vunpack.c.l.b16 %v465
        %v499 = vunpack.c.l.b16 %v466
        %v500 = vunpack.c.l.b16 %v467
        %v501 = vunpack.c.l.b16 %v468
        %v502 = vunpack.c.l.b16 %v469
        %v503 = vunpack.c.l.b16 %v470
        %v504 = vunpack.c.l.b16 %v471
        %v505 = vunpack.c.l.b16 %v472
        %v506 = vunpack.c.l.b16 %v473
        %v507 = vunpack.c.l.b16 %v474
        %v508 = vpack.c.b16 %v493, %v492
        %v509 = vpack.c.b16 %v495, %v494
        %v510 = vpack.c.b16 %v497, %v496
        %v511 = vpack.c.b16 %v499, %v498
        %v512 = vpack.c.b16 %v501, %v500
        %v513 = vpack.c.b16 %v503, %v502
        %v514 = vpack.c.b16 %v505, %v504
        %v515 = vpack.c.b16 %v507, %v506
        %524 = vmatpush.bf16.msra.mxu0 %v515
        %525 = vmatpush.bf16.msra.mxu0 %v514
        %526 = vmatpush.bf16.msra.mxu0 %v513
        %527 = vmatpush.bf16.msra.mxu0 %v512
        %528 = vmatpush.bf16.msra.mxu0 %v511
        %529 = vmatpush.bf16.msra.mxu0 %v510
        %530 = vmatpush.bf16.msra.mxu0 %v509
        %531 = vmatpush.bf16.msra.mxu0 %v508
        %532 = vmatmul.bf16.gmra.mxu0 %v458
        %v533 = vpop.f32.mrf.mxu0
        %v534 = vadd.f32 %v475, %v533
        %v535 = vpop.f32.mrf.mxu0
        %536 = vdwg.mxu0
        %v537 = vld [vmem:[%s6] sm:$0x1]
        %v539 = vperm.slane %v537, 0
        %v541 = vadd.f32 %v534, %v539
        %v542 = vmax.f32 %v541, 0.0
        %v543 = vpack.c.bf16 %v542, %v542
        %v544 = vld [vmem:[#allocation6] sm:$0xf]
        %v545 = vld [vmem:[#allocation6 + $0x4] sm:$0xf]
        %v546 = vld [vmem:[#allocation6 + $0x8] sm:$0xf]
        %v547 = vld [vmem:[#allocation6 + $0xc] sm:$0xf]
        %v548 = vld [vmem:[#allocation6 + $0x10] sm:$0xf]
        %v549 = vld [vmem:[#allocation6 + $0x14] sm:$0xf]
        %v550 = vld [vmem:[#allocation6 + $0x18] sm:$0xf]
        %v551 = vld [vmem:[#allocation6 + $0x1c] sm:$0xf]
        %v552 = vld [vmem:[#allocation6 + $0x20] sm:$0xf]
        %v553 = vld [vmem:[#allocation6 + $0x24] sm:$0xf]
        %v554 = vld [vmem:[#allocation6 + $0x28] sm:$0xf]
        %v555 = vld [vmem:[#allocation6 + $0x2c] sm:$0xf]
        %v556 = vld [vmem:[#allocation6 + $0x30] sm:$0xf]
        %v557 = vld [vmem:[#allocation6 + $0x34] sm:$0xf]
        %v558 = vld [vmem:[#allocation6 + $0x38] sm:$0xf]
        %v559 = vld [vmem:[#allocation6 + $0x3c] sm:$0xf]
        %v560 = vld [vmem:[#allocation2 + $0x8] sm:$0xff]
        %v577 = vunpack.c.l.b16 %v544
        %v578 = vunpack.c.l.b16 %v545
        %v579 = vunpack.c.l.b16 %v546
        %v580 = vunpack.c.l.b16 %v547
        %v581 = vunpack.c.l.b16 %v548
        %v582 = vunpack.c.l.b16 %v549
        %v583 = vunpack.c.l.b16 %v550
        %v584 = vunpack.c.l.b16 %v551
        %v585 = vunpack.c.l.b16 %v552
        %v586 = vunpack.c.l.b16 %v553
        %v587 = vunpack.c.l.b16 %v554
        %v588 = vunpack.c.l.b16 %v555
        %v589 = vunpack.c.l.b16 %v556
        %v590 = vunpack.c.l.b16 %v557
        %v591 = vunpack.c.l.b16 %v558
        %v592 = vunpack.c.l.b16 %v559
        %v593 = vpack.c.b16 %v578, %v577
        %v594 = vpack.c.b16 %v580, %v579
        %v595 = vpack.c.b16 %v582, %v581
        %v596 = vpack.c.b16 %v584, %v583
        %v597 = vpack.c.b16 %v586, %v585
        %v598 = vpack.c.b16 %v588, %v587
        %v599 = vpack.c.b16 %v590, %v589
        %v600 = vpack.c.b16 %v592, %v591
        %609 = vmatpush.bf16.msra.mxu0 %v600
        %610 = vmatpush.bf16.msra.mxu0 %v599
        %611 = vmatpush.bf16.msra.mxu0 %v598
        %612 = vmatpush.bf16.msra.mxu0 %v597
        %613 = vmatpush.bf16.msra.mxu0 %v596
        %614 = vmatpush.bf16.msra.mxu0 %v595
        %615 = vmatpush.bf16.msra.mxu0 %v594
        %616 = vmatpush.bf16.msra.mxu0 %v593
        %617 = vmatmul.bf16.gmra.mxu0 %v543
        %v618 = vpop.f32.mrf.mxu0
        %v619 = vadd.f32 %v560, %v618
        %v620 = vpop.f32.mrf.mxu0
        %621 = vdwg.mxu0
        %v622 = vld [vmem:[%s7] sm:$0x1]
        %v624 = vperm.slane %v622, 0
        %v626 = vadd.f32 %v619, %v624
        %v627 = vmax.f32 %v626, 0.0
        %v628 = vpack.c.bf16 %v627, %v627
        %v629 = vld [vmem:[#allocation8] sm:$0xf]
        %v630 = vld [vmem:[#allocation8 + $0x4] sm:$0xf]
        %v631 = vld [vmem:[#allocation8 + $0x8] sm:$0xf]
        %v632 = vld [vmem:[#allocation8 + $0xc] sm:$0xf]
        %v633 = vld [vmem:[#allocation8 + $0x10] sm:$0xf]
        %v634 = vld [vmem:[#allocation8 + $0x14] sm:$0xf]
        %v635 = vld [vmem:[#allocation8 + $0x18] sm:$0xf]
        %v636 = vld [vmem:[#allocation8 + $0x1c] sm:$0xf]
        %v637 = vld [vmem:[#allocation8 + $0x20] sm:$0xf]
        %v638 = vld [vmem:[#allocation8 + $0x24] sm:$0xf]
        %v639 = vld [vmem:[#allocation8 + $0x28] sm:$0xf]
        %v640 = vld [vmem:[#allocation8 + $0x2c] sm:$0xf]
        %v641 = vld [vmem:[#allocation8 + $0x30] sm:$0xf]
        %v642 = vld [vmem:[#allocation8 + $0x34] sm:$0xf]
        %v643 = vld [vmem:[#allocation8 + $0x38] sm:$0xf]
        %v644 = vld [vmem:[#allocation8 + $0x3c] sm:$0xf]
        %v645 = vld [vmem:[#allocation2 + $0x10] sm:$0xff]
        %v662 = vunpack.c.l.b16 %v629
        %v663 = vunpack.c.l.b16 %v630
        %v664 = vunpack.c.l.b16 %v631
        %v665 = vunpack.c.l.b16 %v632
        %v666 = vunpack.c.l.b16 %v633
        %v667 = vunpack.c.l.b16 %v634
        %v668 = vunpack.c.l.b16 %v635
        %v669 = vunpack.c.l.b16 %v636
        %v670 = vunpack.c.l.b16 %v637
        %v671 = vunpack.c.l.b16 %v638
        %v672 = vunpack.c.l.b16 %v639
        %v673 = vunpack.c.l.b16 %v640
        %v674 = vunpack.c.l.b16 %v641
        %v675 = vunpack.c.l.b16 %v642
        %v676 = vunpack.c.l.b16 %v643
        %v677 = vunpack.c.l.b16 %v644
        %v678 = vpack.c.b16 %v663, %v662
        %v679 = vpack.c.b16 %v665, %v664
        %v680 = vpack.c.b16 %v667, %v666
        %v681 = vpack.c.b16 %v669, %v668
        %v682 = vpack.c.b16 %v671, %v670
        %v683 = vpack.c.b16 %v673, %v672
        %v684 = vpack.c.b16 %v675, %v674
        %v685 = vpack.c.b16 %v677, %v676
        %694 = vmatpush.bf16.msra.mxu0 %v685
        %695 = vmatpush.bf16.msra.mxu0 %v684
        %696 = vmatpush.bf16.msra.mxu0 %v683
        %697 = vmatpush.bf16.msra.mxu0 %v682
        %698 = vmatpush.bf16.msra.mxu0 %v681
        %699 = vmatpush.bf16.msra.mxu0 %v680
        %700 = vmatpush.bf16.msra.mxu0 %v679
        %701 = vmatpush.bf16.msra.mxu0 %v678
        %702 = vmatmul.bf16.gmra.mxu0 %v628
        %v703 = vpop.f32.mrf.mxu0
        %v704 = vadd.f32 %v645, %v703
        %v705 = vpop.f32.mrf.mxu0
        %706 = vdwg.mxu0
        %v707 = vld [vmem:[%s8] sm:$0x1]
        %v709 = vperm.slane %v707, 0
        %v711 = vadd.f32 %v704, %v709
        %712 = vst [vmem:[%s386] sm:$0xff] %v711
        %s713 = sand.u32 %s232, 1
        %s714 = scalar_lea.sflag [#allocation5], %s713
        %s715 = sand.u32 %s232, 1
        %s716 = smul.addr %s715, 8
        %s717 = scalar_lea.vmem [#allocation9], %s716
        // Predicated region
        $region69: #{_forward_impl.1} parent=55 // pred_check
          %p718 = pneg %p242
        $region70: #{_forward_impl.1} parent=55 // pred_check_branch
          %720 = sbr.rel (%p718) target = $region72
        $region71: #{_forward_impl.1} parent=55 // pred_region
          %722 = vsyncadd %s714, 0
          %s723 = smul.addr %s25, 8
          %s724 = scalar_lea.hbm %s9, %s723
          %s726 = sshll.u32 %s717, 4
          %s727 = int_to_ptr.vmem [resolvable:$true] %s726
          %s728 = sshll.u32 %s724, 4
          %s729 = int_to_ptr.hbm [resolvable:$true] %s728
          %731 = dma.vmem_to_hbm [thread:$0]  %s727, 128, %s729, %s714
        $region72: #{_forward_impl.1} parent=55 // pred_fallthru
          _
      $region56: #{_forward_impl.1} parent=5 // pred_fallthru
        _
      %p732 = scmp.le.s32.totalorder 2, %s20
      // Predicated region
      $region73: #{_forward_impl.1} parent=5 // pred_check
        %p733 = pneg %p732
      $region74: #{_forward_impl.1} parent=5 // pred_check_branch
        %735 = sbr.rel (%p733) target = $region76
      $region75: #{_forward_impl.1} parent=5 // pred_region
        %s736 = ssub.s32 %s20, 2
        // Predicated region
        $region77: #{_forward_impl.1} parent=75 // pred_check
          %p737 = pneg %p248
        $region78: #{_forward_impl.1} parent=75 // pred_check_branch
          %739 = sbr.rel (%p737) target = $region80
        $region79: #{_forward_impl.1} parent=75 // pred_region
          %s740 = sand.u32 %s233, 1
          %s741 = scalar_lea.sflag [#allocation5], %s740
          %s742 = sand.u32 %s233, 1
          %s743 = smul.addr %s742, 8
          %s744 = scalar_lea.vmem [#allocation9], %s743
          %746 = dma.done %s741, 128
        $region80: #{_forward_impl.1} parent=75 // pred_fallthru
          _
      $region76: #{_forward_impl.1} parent=5 // pred_fallthru
        _
    $region6: #{_forward_impl.1} parent=1 // loop_footer
      %s24 = sadd.s32 1, %s20
    $region7: #{_forward_impl.1} parent=1 // loop_footer_branch
      %19 = sbr.rel target = $region3
    $region8: #{_forward_impl.1} parent=1 // loop_exit
      _
    %747 = vsyncpa [#allocation4], 1
    %s748 = scalar_lea.sflag [#allocation4], 1
    %749 = vsyncpa %s748, 1
    %750 = vsyncpa [#allocation7], 1
    %751 = vsyncpa [#allocation5], 1
    %s752 = scalar_lea.sflag [#allocation5], 1
    %753 = vsyncpa %s752, 1

</llo_original>
